<compile_context>
chip_gen: v5e
topology: v5e:2x2
jax: 0.10.0
libtpu: 0.0.40
codegen_flags: <defaults>
</compile_context>

<pallas_src>
import functools

import jax
import jax.numpy as jnp
from jax.experimental import pallas as pl
from jax.experimental.pallas import tpu as pltpu

HIDDEN = 128
TB_MAX = 1024  # batch-tile cap (multiple of 8; keeps VMEM < 2 MiB per step)


def _round_up(x, m):
    return (x + m - 1) // m * m


def fcnet_kernel(x_ref, w1_ref, b1_ref, w2_ref, b2_ref, w3_ref, b3_ref, o_ref,
                 xpad_ref):
    n_obs = x_ref.shape[-1]
    fp = xpad_ref.shape[-1]
    if n_obs == fp:
        # Feature dim already lane-aligned; use the tile directly.
        x_in = x_ref[...]
    else:
        # Zero-pad the contraction dim into VMEM scratch (cheap, fully in-VMEM).
        xpad_ref[...] = jnp.zeros_like(xpad_ref)
        xpad_ref[:, :n_obs] = x_ref[...]
        x_in = xpad_ref[...]

    # Layer 1: Linear + ReLU (bf16 operands, f32 accumulate on the MXU).
    h = jnp.dot(x_in.astype(w1_ref.dtype), w1_ref[...],
                preferred_element_type=jnp.float32)
    h = jnp.maximum(h + b1_ref[...], 0.0)
    # Layer 2: Linear + ReLU.
    h = jnp.dot(h.astype(w2_ref.dtype), w2_ref[...],
                preferred_element_type=jnp.float32)
    h = jnp.maximum(h + b2_ref[...], 0.0)
    # Layer 3: Linear (no activation).
    h = jnp.dot(h.astype(w3_ref.dtype), w3_ref[...],
                preferred_element_type=jnp.float32)
    o_ref[...] = (h + b3_ref[...]).astype(o_ref.dtype)


@functools.partial(jax.jit, static_argnames=("n_actions",))
def fcnet_forward(x, prepped, n_actions):
    """x: [B, n_observations] f32 -> [B, n_actions] f32. `prepped` from prepare_fcnet_params."""
    w1, b1, w2, b2, w3, b3 = prepped
    B, n_obs = x.shape
    Fp = w1.shape[0]
    Ap = w3.shape[1]

    # This net is grid-step-overhead bound: prefer a single tile when it fits,
    # otherwise tile at TB_MAX rows per step.
    B8 = _round_up(max(B, 1), 8)
    TB = B8 if B8 <= TB_MAX else TB_MAX
    Bp = _round_up(B8, TB)
    if Bp != B:
        x = jnp.zeros((Bp, n_obs), x.dtype).at[:B, :].set(x)

    wbytes = sum(t.size * t.dtype.itemsize for t in (w1, b1, w2, b2, w3, b3))
    cost = pl.CostEstimate(
        flops=2 * Bp * (Fp * HIDDEN + HIDDEN * HIDDEN + HIDDEN * Ap),
        transcendentals=0,
        bytes_accessed=int(x.size * x.dtype.itemsize + wbytes + Bp * Ap * 4),
    )

    out_p = pl.pallas_call(
        fcnet_kernel,
        out_shape=jax.ShapeDtypeStruct((Bp, Ap), jnp.float32),
        grid=(Bp // TB,),
        in_specs=[
            pl.BlockSpec((TB, n_obs), lambda i: (i, 0)),      # x: tiled over batch
            pl.BlockSpec((Fp, HIDDEN), lambda i: (0, 0)),     # weights/biases: constant
            pl.BlockSpec((1, HIDDEN), lambda i: (0, 0)),      #   index -> VMEM-resident
            pl.BlockSpec((HIDDEN, HIDDEN), lambda i: (0, 0)),
            pl.BlockSpec((1, HIDDEN), lambda i: (0, 0)),
            pl.BlockSpec((HIDDEN, Ap), lambda i: (0, 0)),
            pl.BlockSpec((1, Ap), lambda i: (0, 0)),
        ],
        out_specs=pl.BlockSpec((TB, Ap), lambda i: (i, 0)),
        scratch_shapes=[pltpu.VMEM((TB, Fp), jnp.float32)],
        compiler_params=pltpu.CompilerParams(
            dimension_semantics=("parallel",)),               # v7x: shard batch over 2 TCs
        cost_estimate=cost,
    )(x, w1, b1, w2, b2, w3, b3)

    return out_p[:B, :n_actions]


def xavier_uniform(key, fan_in, fan_out):
    # torch.nn.init.xavier_uniform_ on weight [out, in]; stored as [in, out] for x @ W.
    limit = jnp.sqrt(6.0 / (fan_in + fan_out))
    return jax.random.uniform(key, (fan_in, fan_out), jnp.float32, -limit, limit)


def init_fcnet_params(key, n_observations, n_actions):
    k1, k2, k3 = jax.random.split(key, 3)
    w1 = xavier_uniform(k1, n_observations, HIDDEN)
    b1 = jnp.zeros((HIDDEN,), jnp.float32)
    w2 = xavier_uniform(k2, HIDDEN, HIDDEN)
    b2 = jnp.zeros((HIDDEN,), jnp.float32)
    w3 = xavier_uniform(k3, HIDDEN, n_actions)
    b3 = jnp.zeros((n_actions,), jnp.float32)
    return (w1, b1, w2, b2, w3, b3)


def prepare_fcnet_params(params, n_observations, n_actions,
                         compute_dtype=jnp.bfloat16):
    """One-time prep: pad weights to TPU tile alignment and cast matmul operands to bf16.

    Zero padding contributes exact zeros, so results match the unpadded math."""
    w1, b1, w2, b2, w3, b3 = params
    Fp = _round_up(max(n_observations, 1), 128)
    Ap = _round_up(max(n_actions, 1), 128)
    w1_p = jnp.zeros((Fp, HIDDEN), compute_dtype).at[:n_observations, :].set(
        w1.astype(compute_dtype))
    b1_p = jnp.reshape(b1, (1, HIDDEN)).astype(jnp.float32)
    w2_p = w2.astype(compute_dtype)
    b2_p = jnp.reshape(b2, (1, HIDDEN)).astype(jnp.float32)
    w3_p = jnp.zeros((HIDDEN, Ap), compute_dtype).at[:, :n_actions].set(
        w3.astype(compute_dtype))
    b3_p = jnp.zeros((1, Ap), jnp.float32).at[:, :n_actions].set(
        jnp.reshape(b3, (1, -1)).astype(jnp.float32))
    return (w1_p, b1_p, w2_p, b2_p, w3_p, b3_p)


if __name__ == "__main__":
    n_observations = 8
    n_actions = 4
    batch = 2

    key = jax.random.PRNGKey(0)
    pkey, xkey = jax.random.split(key)
    params = init_fcnet_params(pkey, n_observations, n_actions)
    prepped = prepare_fcnet_params(params, n_observations, n_actions)  # one-time prep

    def ref_f32(xx):
        w1, b1, w2, b2, w3, b3 = params
        h = jnp.maximum(xx @ w1 + b1, 0.0)
        h = jnp.maximum(h @ w2 + b2, 0.0)
        return h @ w3 + b3

    # Small batch (single tile).
    x = jax.random.normal(xkey, (batch, n_observations), jnp.float32)
    out = jax.block_until_ready(fcnet_forward(x, prepped, n_actions))
    assert out.shape == (batch, n_actions)
    # Tolerance loosened vs. the pure-f32 reference because matmul operands are bf16
    # (accumulation stays f32); errors are ~1e-3, well inside 5e-2.
    assert jnp.allclose(out, ref_f32(x), atol=5e-2, rtol=5e-2)

    # Larger batch exercises the multi-step grid path with batch padding
    # (B=2600 -> TB=1024, Bp=3072, grid=(3,)).
    x_big = jax.random.normal(jax.random.PRNGKey(1), (2600, n_observations), jnp.float32)
    out_big = jax.block_until_ready(fcnet_forward(x_big, prepped, n_actions))
    assert out_big.shape == (2600, n_actions)
    assert jnp.allclose(out_big, ref_f32(x_big), atol=5e-2, rtol=5e-2)

    print("KERNEL_OK")
</pallas_src>

<mosaic_0001>
module attributes {stable_mosaic.version = 11 : i64} {
  func.func @fcnet_kernel(%arg0: i32, %arg1: memref<8x8xf32, #tpu.memory_space<vmem>>, %arg2: memref<128x128xbf16, #tpu.memory_space<vmem>>, %arg3: memref<1x128xf32, #tpu.memory_space<vmem>>, %arg4: memref<128x128xbf16, #tpu.memory_space<vmem>>, %arg5: memref<1x128xf32, #tpu.memory_space<vmem>>, %arg6: memref<128x128xbf16, #tpu.memory_space<vmem>>, %arg7: memref<1x128xf32, #tpu.memory_space<vmem>>, %arg8: memref<8x128xf32, #tpu.memory_space<vmem>>, %arg9: memref<8x128xf32, #tpu.memory_space<vmem>>) attributes {dimension_semantics = [#tpu.dimension_semantics<parallel>], iteration_bounds = array<i64: 1>, scalar_prefetch = 0 : i64, scratch_operands = 1 : i64, tpu.core_type = #tpu.core_type<tc>, window_params = [{transform_indices = @transform_0, window_bounds = array<i64: 8, 8>}, {pipeline_mode = #tpu.pipeline_mode<synchronous>, transform_indices = @transform_1, window_bounds = array<i64: 128, 128>}, {pipeline_mode = #tpu.pipeline_mode<synchronous>, transform_indices = @transform_2, window_bounds = array<i64: 1, 128>}, {pipeline_mode = #tpu.pipeline_mode<synchronous>, transform_indices = @transform_3, window_bounds = array<i64: 128, 128>}, {pipeline_mode = #tpu.pipeline_mode<synchronous>, transform_indices = @transform_4, window_bounds = array<i64: 1, 128>}, {pipeline_mode = #tpu.pipeline_mode<synchronous>, transform_indices = @transform_5, window_bounds = array<i64: 128, 128>}, {pipeline_mode = #tpu.pipeline_mode<synchronous>, transform_indices = @transform_6, window_bounds = array<i64: 1, 128>}, {transform_indices = @transform_7, window_bounds = array<i64: 8, 128>}]} {
    %cst = arith.constant 0.000000e+00 : f32
    %0 = vector.broadcast %cst : f32 to vector<8x128xf32>
    %c0 = arith.constant 0 : index
    %c0_0 = arith.constant 0 : index
    %1 = vector.load %arg9[%c0, %c0_0] : memref<8x128xf32, #tpu.memory_space<vmem>>, vector<8x128xf32>
    tpu.vector_store %arg9[%c0, %c0_0], %0 {strides = array<i32>} : memref<8x128xf32, #tpu.memory_space<vmem>>, vector<8x128xf32>,
    %c0_1 = arith.constant 0 : index
    %c0_2 = arith.constant 0 : index
    %2 = vector.load %arg1[%c0_1, %c0_2] : memref<8x8xf32, #tpu.memory_space<vmem>>, vector<8x8xf32>
    %c0_3 = arith.constant 0 : index
    %c0_4 = arith.constant 0 : index
    %3 = vector.load %arg9[%c0_3, %c0_4] : memref<8x128xf32, #tpu.memory_space<vmem>>, vector<8x8xf32>
    tpu.vector_store %arg9[%c0_3, %c0_4], %2 {strides = array<i32>} : memref<8x128xf32, #tpu.memory_space<vmem>>, vector<8x8xf32>,
    %c0_5 = arith.constant 0 : index
    %c0_6 = arith.constant 0 : index
    %4 = vector.load %arg9[%c0_5, %c0_6] : memref<8x128xf32, #tpu.memory_space<vmem>>, vector<8x128xf32>
    %5 = arith.truncf %4 : vector<8x128xf32> to vector<8x128xbf16>
    %c0_7 = arith.constant 0 : index
    %c0_8 = arith.constant 0 : index
    %6 = vector.load %arg2[%c0_7, %c0_8] : memref<128x128xbf16, #tpu.memory_space<vmem>>, vector<128x128xbf16>
    %cst_9 = arith.constant dense<0.000000e+00> : vector<8x128xf32>
    %7 = tpu.matmul %5, %6, %cst_9 {dimension_numbers = #tpu.dot_dimension_numbers<[1], [0], [0], [1], [0, 0, 1, 1], [], []>} : vector<8x128xbf16>, vector<128x128xbf16>, vector<8x128xf32> -> vector<8x128xf32>
    %c0_10 = arith.constant 0 : index
    %c0_11 = arith.constant 0 : index
    %8 = vector.load %arg3[%c0_10, %c0_11] : memref<1x128xf32, #tpu.memory_space<vmem>>, vector<1x128xf32>
    %9 = vector.broadcast %8 : vector<1x128xf32> to vector<8x128xf32>
    %10 = arith.addf %7, %9 : vector<8x128xf32>
    %cst_12 = arith.constant 0.000000e+00 : f32
    %11 = vector.broadcast %cst_12 : f32 to vector<8x128xf32>
    %12 = arith.maximumf %10, %11 : vector<8x128xf32>
    %13 = arith.truncf %12 : vector<8x128xf32> to vector<8x128xbf16>
    %c0_13 = arith.constant 0 : index
    %c0_14 = arith.constant 0 : index
    %14 = vector.load %arg4[%c0_13, %c0_14] : memref<128x128xbf16, #tpu.memory_space<vmem>>, vector<128x128xbf16>
    %cst_15 = arith.constant dense<0.000000e+00> : vector<8x128xf32>
    %15 = tpu.matmul %13, %14, %cst_15 {dimension_numbers = #tpu.dot_dimension_numbers<[1], [0], [0], [1], [0, 0, 1, 1], [], []>} : vector<8x128xbf16>, vector<128x128xbf16>, vector<8x128xf32> -> vector<8x128xf32>
    %c0_16 = arith.constant 0 : index
    %c0_17 = arith.constant 0 : index
    %16 = vector.load %arg5[%c0_16, %c0_17] : memref<1x128xf32, #tpu.memory_space<vmem>>, vector<1x128xf32>
    %17 = vector.broadcast %16 : vector<1x128xf32> to vector<8x128xf32>
    %18 = arith.addf %15, %17 : vector<8x128xf32>
    %cst_18 = arith.constant 0.000000e+00 : f32
    %19 = vector.broadcast %cst_18 : f32 to vector<8x128xf32>
    %20 = arith.maximumf %18, %19 : vector<8x128xf32>
    %21 = arith.truncf %20 : vector<8x128xf32> to vector<8x128xbf16>
    %c0_19 = arith.constant 0 : index
    %c0_20 = arith.constant 0 : index
    %22 = vector.load %arg6[%c0_19, %c0_20] : memref<128x128xbf16, #tpu.memory_space<vmem>>, vector<128x128xbf16>
    %cst_21 = arith.constant dense<0.000000e+00> : vector<8x128xf32>
    %23 = tpu.matmul %21, %22, %cst_21 {dimension_numbers = #tpu.dot_dimension_numbers<[1], [0], [0], [1], [0, 0, 1, 1], [], []>} : vector<8x128xbf16>, vector<128x128xbf16>, vector<8x128xf32> -> vector<8x128xf32>
    %c0_22 = arith.constant 0 : index
    %c0_23 = arith.constant 0 : index
    %24 = vector.load %arg7[%c0_22, %c0_23] : memref<1x128xf32, #tpu.memory_space<vmem>>, vector<1x128xf32>
    %25 = vector.broadcast %24 : vector<1x128xf32> to vector<8x128xf32>
    %26 = arith.addf %23, %25 : vector<8x128xf32>
    %c0_24 = arith.constant 0 : index
    %c0_25 = arith.constant 0 : index
    %27 = vector.load %arg8[%c0_24, %c0_25] : memref<8x128xf32, #tpu.memory_space<vmem>>, vector<8x128xf32>
    tpu.vector_store %arg8[%c0_24, %c0_25], %26 {strides = array<i32>} : memref<8x128xf32, #tpu.memory_space<vmem>>, vector<8x128xf32>,
    return
  }
  func.func @transform_0(%arg0: i32) -> (i32, i32) {
    %c0_i32 = arith.constant 0 : i32
    %c0_i32_0 = arith.constant 0 : i32
    return %arg0, %c0_i32 : i32, i32
  }
  func.func @transform_1(%arg0: i32) -> (i32, i32) {
    %c0_i32 = arith.constant 0 : i32
    %c0_i32_0 = arith.constant 0 : i32
    %c0_i32_1 = arith.constant 0 : i32
    return %c0_i32, %c0_i32_0 : i32, i32
  }
  func.func @transform_2(%arg0: i32) -> (i32, i32) {
    %c0_i32 = arith.constant 0 : i32
    %c0_i32_0 = arith.constant 0 : i32
    %c0_i32_1 = arith.constant 0 : i32
    return %c0_i32, %c0_i32_0 : i32, i32
  }
  func.func @transform_3(%arg0: i32) -> (i32, i32) {
    %c0_i32 = arith.constant 0 : i32
    %c0_i32_0 = arith.constant 0 : i32
    %c0_i32_1 = arith.constant 0 : i32
    return %c0_i32, %c0_i32_0 : i32, i32
  }
  func.func @transform_4(%arg0: i32) -> (i32, i32) {
    %c0_i32 = arith.constant 0 : i32
    %c0_i32_0 = arith.constant 0 : i32
    %c0_i32_1 = arith.constant 0 : i32
    return %c0_i32, %c0_i32_0 : i32, i32
  }
  func.func @transform_5(%arg0: i32) -> (i32, i32) {
    %c0_i32 = arith.constant 0 : i32
    %c0_i32_0 = arith.constant 0 : i32
    %c0_i32_1 = arith.constant 0 : i32
    return %c0_i32, %c0_i32_0 : i32, i32
  }
  func.func @transform_6(%arg0: i32) -> (i32, i32) {
    %c0_i32 = arith.constant 0 : i32
    %c0_i32_0 = arith.constant 0 : i32
    %c0_i32_1 = arith.constant 0 : i32
    return %c0_i32, %c0_i32_0 : i32, i32
  }
  func.func @transform_7(%arg0: i32) -> (i32, i32) {
    %c0_i32 = arith.constant 0 : i32
    %c0_i32_0 = arith.constant 0 : i32
    return %arg0, %c0_i32 : i32, i32
  }
}

</mosaic_0001>

<llo_original>
// kernel: fcnet_forward.1
$region0: #{fcnet_forward.1}
  #allocation0 [shape = 'u32[]', space=smem, size = 0x4, offset = 0x4, fixed_abs, tag = 'smem constant byte address 0x4 - core index']
  #allocation1 [shape = 'u32[72,128]{1,0:T(1,128)}', space=vmem, size = 0x9000, scoped, tag = 'internal scratch']
  #allocation2 [shape = 'f32[8,128]{1,0:T(8,128)}', space=vmem, size = 0x1000, scoped, tag = 'scratch operand']
  %s0 = inlined_call_operand.vmem [shape: f32[8,8], index: 0, kind: input, shape index: {}]
  %s1 = inlined_call_operand.hbm [shape: bf16[128,128], index: 1, kind: input, shape index: {}]
  %s2 = inlined_call_operand.vmem [shape: f32[1,128], index: 2, kind: input, shape index: {}]
  %s3 = inlined_call_operand.hbm [shape: bf16[128,128], index: 3, kind: input, shape index: {}]
  %s4 = inlined_call_operand.vmem [shape: f32[1,128], index: 4, kind: input, shape index: {}]
  %s5 = inlined_call_operand.hbm [shape: bf16[128,128], index: 5, kind: input, shape index: {}]
  %s6 = inlined_call_operand.vmem [shape: f32[1,128], index: 6, kind: input, shape index: {}]
  %s7 = inlined_call_operand.vmem [shape: f32[8,128], index: 7, kind: output, shape index: {}]
  %s8 = sld [smem:[#allocation0]]
  $region50: #{fcnet_forward.1} parent=0
    _
  %s10 = ssub.s32 1, %s8
  %s11 = scalar_select 0, %s10, %s8
  $region1: #{fcnet_forward.1} parent=0
    #allocation3 [shape = 'u8[32768]{0}', space=vmem, size = 0x8000, scoped, tag = 'input window, operand 1, single buffered']
    #allocation4 [shape = 's32[1]{0}', space=sflag, size = 0x4, scoped, tag = 'scoped memory for fcnet_forward.1']
    #allocation5 [shape = 'u8[32768]{0}', space=vmem, size = 0x8000, scoped, tag = 'input window, operand 3, single buffered']
    #allocation6 [shape = 's32[1]{0}', space=sflag, size = 0x4, scoped, tag = 'scoped memory for fcnet_forward.1']
    #allocation7 [shape = 'u8[32768]{0}', space=vmem, size = 0x8000, scoped, tag = 'input window, operand 5, single buffered']
    %12 = vsyncpa [#allocation4], 0
    %13 = vsyncpa [#allocation6], 0
    // Predicated region
    $region2: #{fcnet_forward.1} parent=1 // pred_check
      _
    $region3: #{fcnet_forward.1} parent=1 // pred_check_branch
      %15 = sbr.rel (0) target = $region5
    $region4: #{fcnet_forward.1} parent=1 // pred_region
      _
    $region5: #{fcnet_forward.1} parent=1 // pred_fallthru
      _
    // Predicated region
    $region6: #{fcnet_forward.1} parent=1 // pred_check
      _
    $region7: #{fcnet_forward.1} parent=1 // pred_check_branch
      %17 = sbr.rel (0) target = $region9
    $region8: #{fcnet_forward.1} parent=1 // pred_region
      %19 = vsyncadd [#allocation4], 0
      %s20 = sshll.u32 %s1, 4
      %s21 = int_to_ptr.hbm [resolvable:$true] %s20
      %s22 = sshll.u32 [#allocation3], 4
      %s23 = int_to_ptr.vmem [resolvable:$true] %s22
      %28 = dma.hbm_to_vmem [thread:$0]  %s21, 1024, %s23, [#allocation4], 64, 64, 4
    $region9: #{fcnet_forward.1} parent=1 // pred_fallthru
      _
    // Predicated region
    $region10: #{fcnet_forward.1} parent=1 // pred_check
      _
    $region11: #{fcnet_forward.1} parent=1 // pred_check_branch
      %30 = sbr.rel (0) target = $region13
    $region12: #{fcnet_forward.1} parent=1 // pred_region
      _
    $region13: #{fcnet_forward.1} parent=1 // pred_fallthru
      _
    // Predicated region
    $region14: #{fcnet_forward.1} parent=1 // pred_check
      _
    $region15: #{fcnet_forward.1} parent=1 // pred_check_branch
      %32 = sbr.rel (0) target = $region17
    $region16: #{fcnet_forward.1} parent=1 // pred_region
      %34 = vsyncadd [#allocation6], 0
      %s35 = sshll.u32 %s3, 4
      %s36 = int_to_ptr.hbm [resolvable:$true] %s35
      %s37 = sshll.u32 [#allocation5], 4
      %s38 = int_to_ptr.vmem [resolvable:$true] %s37
      %43 = dma.hbm_to_vmem [thread:$0]  %s36, 1024, %s38, [#allocation6], 64, 64, 4
    $region17: #{fcnet_forward.1} parent=1 // pred_fallthru
      _
    // Predicated region
    $region18: #{fcnet_forward.1} parent=1 // pred_check
      _
    $region19: #{fcnet_forward.1} parent=1 // pred_check_branch
      %45 = sbr.rel (0) target = $region21
    $region20: #{fcnet_forward.1} parent=1 // pred_region
      _
    $region21: #{fcnet_forward.1} parent=1 // pred_fallthru
      _
    // Predicated region
    $region22: #{fcnet_forward.1} parent=1 // pred_check
      _
    $region23: #{fcnet_forward.1} parent=1 // pred_check_branch
      %47 = sbr.rel (0) target = $region25
    $region24: #{fcnet_forward.1} parent=1 // pred_region
      %49 = vsyncadd [#allocation6], 0
      %s50 = sshll.u32 %s5, 4
      %s51 = int_to_ptr.hbm [resolvable:$true] %s50
      %s52 = sshll.u32 [#allocation7], 4
      %s53 = int_to_ptr.vmem [resolvable:$true] %s52
      %58 = dma.hbm_to_vmem [thread:$0]  %s51, 1024, %s53, [#allocation6], 64, 64, 4
    $region25: #{fcnet_forward.1} parent=1 // pred_fallthru
      _
    // Predicated region
    $region26: #{fcnet_forward.1} parent=1 // pred_check
      _
    $region27: #{fcnet_forward.1} parent=1 // pred_check_branch
      %60 = sbr.rel (0) target = $region29
    $region28: #{fcnet_forward.1} parent=1 // pred_region
      _
    $region29: #{fcnet_forward.1} parent=1 // pred_fallthru
      _
    // Predicated region
    $region30: #{fcnet_forward.1} parent=1 // pred_check
      _
    $region31: #{fcnet_forward.1} parent=1 // pred_check_branch
      %62 = sbr.rel (0) target = $region33
    $region32: #{fcnet_forward.1} parent=1 // pred_region
      %64 = dma.done [#allocation4], 1024
    $region33: #{fcnet_forward.1} parent=1 // pred_fallthru
      _
    // Predicated region
    $region34: #{fcnet_forward.1} parent=1 // pred_check
      _
    $region35: #{fcnet_forward.1} parent=1 // pred_check_branch
      %66 = sbr.rel (0) target = $region37
    $region36: #{fcnet_forward.1} parent=1 // pred_region
      %68 = dma.done [#allocation6], 1024
    $region37: #{fcnet_forward.1} parent=1 // pred_fallthru
      _
    // Predicated region
    $region38: #{fcnet_forward.1} parent=1 // pred_check
      _
    $region39: #{fcnet_forward.1} parent=1 // pred_check_branch
      %70 = sbr.rel (0) target = $region41
    $region40: #{fcnet_forward.1} parent=1 // pred_region
      %72 = dma.done [#allocation6], 1024
    $region41: #{fcnet_forward.1} parent=1 // pred_fallthru
      _
    %73 = vst [vmem:[#allocation2] sm:$0xff] 0.0
    %v74 = vld [vmem:[%s0] sm:$0xff]
    %vm75 = vcmask 64512
    %76 = vst.msk [vmem:[#allocation2] sm:$0xff] %vm75, %v74
    %v77 = vld [vmem:[#allocation2] sm:$0xff]
    %v78 = vpack.c.bf16 %v77, %v77
    %v79 = vld [vmem:[#allocation3] sm:$0xf]
    %v80 = vld [vmem:[#allocation3 + $0x4] sm:$0xf]
    %v81 = vld [vmem:[#allocation3 + $0x8] sm:$0xf]
    %v82 = vld [vmem:[#allocation3 + $0xc] sm:$0xf]
    %v83 = vld [vmem:[#allocation3 + $0x10] sm:$0xf]
    %v84 = vld [vmem:[#allocation3 + $0x14] sm:$0xf]
    %v85 = vld [vmem:[#allocation3 + $0x18] sm:$0xf]
    %v86 = vld [vmem:[#allocation3 + $0x1c] sm:$0xf]
    %v87 = vld [vmem:[#allocation3 + $0x20] sm:$0xf]
    %v88 = vld [vmem:[#allocation3 + $0x24] sm:$0xf]
    %v89 = vld [vmem:[#allocation3 + $0x28] sm:$0xf]
    %v90 = vld [vmem:[#allocation3 + $0x2c] sm:$0xf]
    %v91 = vld [vmem:[#allocation3 + $0x30] sm:$0xf]
    %v92 = vld [vmem:[#allocation3 + $0x34] sm:$0xf]
    %v93 = vld [vmem:[#allocation3 + $0x38] sm:$0xf]
    %v94 = vld [vmem:[#allocation3 + $0x3c] sm:$0xf]
    %v95 = vld [vmem:[%s2] sm:$0x1]
    %v97 = vperm.slane %v95, 0
    %v115 = vunpack.c.l.b16 %v79
    %v116 = vunpack.c.l.b16 %v80
    %v117 = vunpack.c.l.b16 %v81
    %v118 = vunpack.c.l.b16 %v82
    %v119 = vunpack.c.l.b16 %v83
    %v120 = vunpack.c.l.b16 %v84
    %v121 = vunpack.c.l.b16 %v85
    %v122 = vunpack.c.l.b16 %v86
    %v123 = vunpack.c.l.b16 %v87
    %v124 = vunpack.c.l.b16 %v88
    %v125 = vunpack.c.l.b16 %v89
    %v126 = vunpack.c.l.b16 %v90
    %v127 = vunpack.c.l.b16 %v91
    %v128 = vunpack.c.l.b16 %v92
    %v129 = vunpack.c.l.b16 %v93
    %v130 = vunpack.c.l.b16 %v94
    %v131 = vpack.c.b16 %v116, %v115
    %v132 = vpack.c.b16 %v118, %v117
    %v133 = vpack.c.b16 %v120, %v119
    %v134 = vpack.c.b16 %v122, %v121
    %v135 = vpack.c.b16 %v124, %v123
    %v136 = vpack.c.b16 %v126, %v125
    %v137 = vpack.c.b16 %v128, %v127
    %v138 = vpack.c.b16 %v130, %v129
    %147 = vmatpush.bf16.msra.mxu0 %v138
    %148 = vmatpush.bf16.msra.mxu0 %v137
    %149 = vmatpush.bf16.msra.mxu0 %v136
    %150 = vmatpush.bf16.msra.mxu0 %v135
    %151 = vmatpush.bf16.msra.mxu0 %v134
    %152 = vmatpush.bf16.msra.mxu0 %v133
    %153 = vmatpush.bf16.msra.mxu0 %v132
    %154 = vmatpush.bf16.msra.mxu0 %v131
    %155 = vmatmul.bf16.gmra.mxu0 %v78
    %v156 = vpop.f32.mrf.mxu0
    %v157 = vadd.f32 %v97, %v156
    %v158 = vpop.f32.mrf.mxu0
    %159 = vdwg.mxu0
    %v160 = vmax.f32 %v157, 0.0
    %v161 = vpack.c.bf16 %v160, %v160
    %v162 = vld [vmem:[#allocation5] sm:$0xf]
    %v163 = vld [vmem:[#allocation5 + $0x4] sm:$0xf]
    %v164 = vld [vmem:[#allocation5 + $0x8] sm:$0xf]
    %v165 = vld [vmem:[#allocation5 + $0xc] sm:$0xf]
    %v166 = vld [vmem:[#allocation5 + $0x10] sm:$0xf]
    %v167 = vld [vmem:[#allocation5 + $0x14] sm:$0xf]
    %v168 = vld [vmem:[#allocation5 + $0x18] sm:$0xf]
    %v169 = vld [vmem:[#allocation5 + $0x1c] sm:$0xf]
    %v170 = vld [vmem:[#allocation5 + $0x20] sm:$0xf]
    %v171 = vld [vmem:[#allocation5 + $0x24] sm:$0xf]
    %v172 = vld [vmem:[#allocation5 + $0x28] sm:$0xf]
    %v173 = vld [vmem:[#allocation5 + $0x2c] sm:$0xf]
    %v174 = vld [vmem:[#allocation5 + $0x30] sm:$0xf]
    %v175 = vld [vmem:[#allocation5 + $0x34] sm:$0xf]
    %v176 = vld [vmem:[#allocation5 + $0x38] sm:$0xf]
    %v177 = vld [vmem:[#allocation5 + $0x3c] sm:$0xf]
    %v178 = vld [vmem:[%s4] sm:$0x1]
    %v180 = vperm.slane %v178, 0
    %v198 = vunpack.c.l.b16 %v162
    %v199 = vunpack.c.l.b16 %v163
    %v200 = vunpack.c.l.b16 %v164
    %v201 = vunpack.c.l.b16 %v165
    %v202 = vunpack.c.l.b16 %v166
    %v203 = vunpack.c.l.b16 %v167
    %v204 = vunpack.c.l.b16 %v168
    %v205 = vunpack.c.l.b16 %v169
    %v206 = vunpack.c.l.b16 %v170
    %v207 = vunpack.c.l.b16 %v171
    %v208 = vunpack.c.l.b16 %v172
    %v209 = vunpack.c.l.b16 %v173
    %v210 = vunpack.c.l.b16 %v174
    %v211 = vunpack.c.l.b16 %v175
    %v212 = vunpack.c.l.b16 %v176
    %v213 = vunpack.c.l.b16 %v177
    %v214 = vpack.c.b16 %v199, %v198
    %v215 = vpack.c.b16 %v201, %v200
    %v216 = vpack.c.b16 %v203, %v202
    %v217 = vpack.c.b16 %v205, %v204
    %v218 = vpack.c.b16 %v207, %v206
    %v219 = vpack.c.b16 %v209, %v208
    %v220 = vpack.c.b16 %v211, %v210
    %v221 = vpack.c.b16 %v213, %v212
    %230 = vmatpush.bf16.msra.mxu0 %v221
    %231 = vmatpush.bf16.msra.mxu0 %v220
    %232 = vmatpush.bf16.msra.mxu0 %v219
    %233 = vmatpush.bf16.msra.mxu0 %v218
    %234 = vmatpush.bf16.msra.mxu0 %v217
    %235 = vmatpush.bf16.msra.mxu0 %v216
    %236 = vmatpush.bf16.msra.mxu0 %v215
    %237 = vmatpush.bf16.msra.mxu0 %v214
    %238 = vmatmul.bf16.gmra.mxu0 %v161
    %v239 = vpop.f32.mrf.mxu0
    %v240 = vadd.f32 %v180, %v239
    %v241 = vpop.f32.mrf.mxu0
    %242 = vdwg.mxu0
    %v243 = vmax.f32 %v240, 0.0
    %v244 = vpack.c.bf16 %v243, %v243
    %v245 = vld [vmem:[#allocation7] sm:$0xf]
    %v246 = vld [vmem:[#allocation7 + $0x4] sm:$0xf]
    %v247 = vld [vmem:[#allocation7 + $0x8] sm:$0xf]
    %v248 = vld [vmem:[#allocation7 + $0xc] sm:$0xf]
    %v249 = vld [vmem:[#allocation7 + $0x10] sm:$0xf]
    %v250 = vld [vmem:[#allocation7 + $0x14] sm:$0xf]
    %v251 = vld [vmem:[#allocation7 + $0x18] sm:$0xf]
    %v252 = vld [vmem:[#allocation7 + $0x1c] sm:$0xf]
    %v253 = vld [vmem:[#allocation7 + $0x20] sm:$0xf]
    %v254 = vld [vmem:[#allocation7 + $0x24] sm:$0xf]
    %v255 = vld [vmem:[#allocation7 + $0x28] sm:$0xf]
    %v256 = vld [vmem:[#allocation7 + $0x2c] sm:$0xf]
    %v257 = vld [vmem:[#allocation7 + $0x30] sm:$0xf]
    %v258 = vld [vmem:[#allocation7 + $0x34] sm:$0xf]
    %v259 = vld [vmem:[#allocation7 + $0x38] sm:$0xf]
    %v260 = vld [vmem:[#allocation7 + $0x3c] sm:$0xf]
    %v261 = vld [vmem:[%s6] sm:$0x1]
    %v263 = vperm.slane %v261, 0
    %v281 = vunpack.c.l.b16 %v245
    %v282 = vunpack.c.l.b16 %v246
    %v283 = vunpack.c.l.b16 %v247
    %v284 = vunpack.c.l.b16 %v248
    %v285 = vunpack.c.l.b16 %v249
    %v286 = vunpack.c.l.b16 %v250
    %v287 = vunpack.c.l.b16 %v251
    %v288 = vunpack.c.l.b16 %v252
    %v289 = vunpack.c.l.b16 %v253
    %v290 = vunpack.c.l.b16 %v254
    %v291 = vunpack.c.l.b16 %v255
    %v292 = vunpack.c.l.b16 %v256
    %v293 = vunpack.c.l.b16 %v257
    %v294 = vunpack.c.l.b16 %v258
    %v295 = vunpack.c.l.b16 %v259
    %v296 = vunpack.c.l.b16 %v260
    %v297 = vpack.c.b16 %v282, %v281
    %v298 = vpack.c.b16 %v284, %v283
    %v299 = vpack.c.b16 %v286, %v285
    %v300 = vpack.c.b16 %v288, %v287
    %v301 = vpack.c.b16 %v290, %v289
    %v302 = vpack.c.b16 %v292, %v291
    %v303 = vpack.c.b16 %v294, %v293
    %v304 = vpack.c.b16 %v296, %v295
    %313 = vmatpush.bf16.msra.mxu0 %v304
    %314 = vmatpush.bf16.msra.mxu0 %v303
    %315 = vmatpush.bf16.msra.mxu0 %v302
    %316 = vmatpush.bf16.msra.mxu0 %v301
    %317 = vmatpush.bf16.msra.mxu0 %v300
    %318 = vmatpush.bf16.msra.mxu0 %v299
    %319 = vmatpush.bf16.msra.mxu0 %v298
    %320 = vmatpush.bf16.msra.mxu0 %v297
    %321 = vmatmul.bf16.gmra.mxu0 %v244
    %v322 = vpop.f32.mrf.mxu0
    %v323 = vadd.f32 %v263, %v322
    %v324 = vpop.f32.mrf.mxu0
    %325 = vdwg.mxu0
    %326 = vst [vmem:[%s7] sm:$0xff] %v323
    // Predicated region
    $region42: #{fcnet_forward.1} parent=1 // pred_check
      _
    $region43: #{fcnet_forward.1} parent=1 // pred_check_branch
      %328 = sbr.rel (0) target = $region45
    $region44: #{fcnet_forward.1} parent=1 // pred_region
      _
    $region45: #{fcnet_forward.1} parent=1 // pred_fallthru
      _
    // Predicated region
    $region46: #{fcnet_forward.1} parent=1 // pred_check
      _
    $region47: #{fcnet_forward.1} parent=1 // pred_check_branch
      %330 = sbr.rel (0) target = $region49
    $region48: #{fcnet_forward.1} parent=1 // pred_region
      _
    $region49: #{fcnet_forward.1} parent=1 // pred_fallthru
      _
    %331 = vsyncpa [#allocation4], 1
    %332 = vsyncpa [#allocation6], 1

</llo_original>
